<compile_context>
chip_gen: v7x
topology: tpu7x:2x2x1
jax: 0.10.0
libtpu: 0.0.40
codegen_flags: <defaults>
</compile_context>

<pallas_src>
import functools

import jax
import jax.numpy as jnp
from jax.experimental import pallas as pl
from jax.experimental.pallas import tpu as pltpu


def _round_up(x, m):
    return (x + m - 1) // m * m


def _num_row_tiles(H, PH):
    # Split H so the grid is (N, C, NH): balances the 2 TensorCores on v7x
    # and keeps per-step VMEM small.  TH must be a multiple of 8 (BlockSpec
    # sublane constraint) unless it equals H.
    for nh in (4, 2):
        th = H // nh
        if H % nh == 0 and th % 8 == 0 and th >= max(8, 2 * PH):
            return nh
    return 1


def _dwconv_same_kernel(g_ref, x_ref, o_ref, xb_ref, *,
                        H, W, TH, THP, WP, KH, KW, NH):
    """One (batch, channel, row-tile) step of the depthwise 'same' conv.

    g_ref : SMEM f32[KH*KW]   -- shared diagonal kernel G (row-major taps)
    x_ref : VMEM f32[H, W]    -- full channel (resident across its NH tiles)
    o_ref : VMEM f32[TH, W]   -- output rows [t*TH, (t+1)*TH) of this channel
    xb_ref: VMEM f32[THP, WP] -- zero-halo, lane-dense scratch slab
      layout: xb[0:TH]        = x[r0 : r0+TH]          (tile rows, aligned)
              xb[TH:TH+PH]    = x[r0+TH : r0+TH+PH]    (halo below, or 0)
              xb[THP-PH:THP]  = x[r0-PH : r0]          (halo above, or 0;
                                wrap-around target of the downward roll)
              xb[:, W:WP]     = 0                      (lane pad; wrap-around
                                target of the horizontal rolls)
    """
    PH, PW = KH // 2, KW // 2
    t = pl.program_id(2)
    r0 = t * TH
    if TH % 8 == 0:
        r0 = pl.multiple_of(r0, 8)

    # ---- stage this tile into the zero-halo scratch (no edge masks) -------
    if WP > W:
        xb_ref[:, W:] = jnp.zeros((THP, WP - W), jnp.float32)
    xb_ref[0:TH, 0:W] = x_ref[pl.ds(r0, TH), :]          # aligned copy
    if PH > 0:
        @pl.when(t < NH - 1)
        def _():
            xb_ref[TH:TH + PH, 0:W] = x_ref[pl.ds(r0 + TH, PH), :]

        @pl.when(t == NH - 1)
        def _():
            xb_ref[TH:TH + PH, 0:W] = jnp.zeros((PH, W), jnp.float32)

        @pl.when(t > 0)
        def _():
            xb_ref[THP - PH:THP, 0:W] = x_ref[pl.ds(r0 - PH, PH), :]

        @pl.when(t == 0)
        def _():
            xb_ref[THP - PH:THP, 0:W] = jnp.zeros((PH, W), jnp.float32)

    # ---- separable-style accumulation: PW*2 lane rolls + (KH-1) sublane ---
    g = [g_ref[k] for k in range(KH * KW)]               # SMEM scalars, hoisted
    xb = xb_ref[...]                                     # (THP, WP) f32

    hshift = {0: xb}
    for d in range(1, PW + 1):
        hshift[-d] = pltpu.roll(xb, shift=d, axis=1)              # x[., l-d]
        hshift[d] = pltpu.roll(xb, shift=(WP - d) % WP, axis=1)   # x[., l+d]

    acc = None
    for kh in range(KH):
        row = None
        for kw in range(KW):
            term = g[kh * KW + kw] * hshift[kw - PW]
            row = term if row is None else row + term
        dy = kh - PH
        if dy != 0:
            row = pltpu.roll(row, shift=(-dy) % THP, axis=0)      # row[j+dy]
        acc = row if acc is None else acc + row

    o_ref[...] = acc[0:TH, 0:W]


@jax.jit
def conv2d_blockdiag_same(ori, G):
    """y = conv2d(ori, block_diag_over_channels(G), padding='same').

    ori: f32[N, C, H, W] (NCHW);  G: f32[KH, KW] (the shared diagonal kernel).
    """
    N, C, H, W = ori.shape
    KH, KW = G.shape
    if KH % 2 != 1 or KW % 2 != 1:
        raise ValueError("only odd kernel sizes supported for 'same' padding")
    PH, PW = KH // 2, KW // 2

    NH = _num_row_tiles(H, PH)
    TH = H // NH
    THP = _round_up(TH + 2 * PH, 8)       # scratch rows: tile + both halos
    WP = _round_up(W + PW, 128)           # lane-dense scratch width

    kernel = functools.partial(
        _dwconv_same_kernel,
        H=H, W=W, TH=TH, THP=THP, WP=WP, KH=KH, KW=KW, NH=NH)

    cost = pl.CostEstimate(
        flops=2 * N * C * H * W * KH * KW,
        transcendentals=0,
        bytes_accessed=2 * N * C * H * W * 4 + KH * KW * 4)

    return pl.pallas_call(
        kernel,
        out_shape=jax.ShapeDtypeStruct((N, C, H, W), jnp.float32),
        grid=(N, C, NH),
        in_specs=[
            pl.BlockSpec(memory_space=pltpu.SMEM),                 # G taps
            pl.BlockSpec((None, None, H, W),
                         lambda n, c, t: (n, c, 0, 0)),            # channel slab
        ],
        out_specs=pl.BlockSpec((None, None, TH, W),
                               lambda n, c, t: (n, c, t, 0)),
        scratch_shapes=[pltpu.VMEM((THP, WP), jnp.float32)],
        compiler_params=pltpu.CompilerParams(
            dimension_semantics=("parallel", "parallel", "parallel"),
            vmem_limit_bytes=32 * 1024 * 1024),
        cost_estimate=cost,
    )(G.reshape(-1).astype(jnp.float32), ori.astype(jnp.float32))


if __name__ == "__main__":
    # Small shapes consistent with the module (3 channels; spatial downsized
    # from 480x720 but chosen to exercise the production code paths:
    # H=64 -> 4 row tiles with cross-tile halos, W=200 -> non-multiple-of-128
    # width with lane-padded scratch and masked edge stores).
    C, H, W = 3, 64, 200
    KH, KW = 3, 3

    key = jax.random.PRNGKey(0)
    kg, kx = jax.random.split(key)
    G = jax.random.normal(kg, (KH, KW), dtype=jnp.float32)   # stands in for G.mat

    ori_param = jnp.full((1, C, H, W), 0.5, dtype=jnp.float32)   # self.ori init
    ori_rand = jax.random.normal(kx, (1, C, H, W), dtype=jnp.float32)

    # Reference: the dense block-diagonal OIHW weight, exactly as the module
    # builds it.
    zero = jnp.zeros((KH, KW), jnp.float32)
    weight = jnp.stack(
        [jnp.stack([G if ci == co else zero for ci in range(C)], axis=0)
         for co in range(C)], axis=0)                            # (C, C, KH, KW)

    def ref_conv(x):
        return jax.lax.conv_general_dilated(
            x, weight, window_strides=(1, 1), padding="SAME",
            dimension_numbers=("NCHW", "OIHW", "NCHW"),
            precision=jax.lax.Precision.HIGHEST)

    for name, x in (("ori=0.5 (module init)", ori_param),
                    ("ori=random", ori_rand)):
        y = jax.block_until_ready(conv2d_blockdiag_same(x, G))
        y_ref = jax.block_until_ready(ref_conv(x))
        assert y.shape == x.shape
        assert jnp.allclose(y, y_ref, atol=1e-5, rtol=1e-5), (
            f"mismatch vs reference conv for {name}: "
            f"max abs err = {jnp.max(jnp.abs(y - y_ref))}")

    print("KERNEL_OK")
</pallas_src>

<mosaic_0001>
module attributes {stable_mosaic.version = 11 : i64} {
  func.func @_dwconv_same_kernel(%arg0: i32, %arg1: i32, %arg2: i32, %arg3: memref<9xf32, #tpu.memory_space<smem>>, %arg4: memref<1x1x64x200xf32, #tpu.memory_space<vmem>>, %arg5: memref<1x1x16x200xf32, #tpu.memory_space<vmem>>, %arg6: memref<24x256xf32, #tpu.memory_space<vmem>>) attributes {dimension_semantics = [#tpu.dimension_semantics<parallel>, #tpu.dimension_semantics<parallel>, #tpu.dimension_semantics<parallel>], iteration_bounds = array<i64: 1, 3, 4>, scalar_prefetch = 0 : i64, scratch_operands = 1 : i64, tpu.core_type = #tpu.core_type<tc>, window_params = [{transform_indices = @transform_0, window_bounds = array<i64: 9>}, {transform_indices = @transform_1, window_bounds = array<i64: 1, 1, 64, 200>}, {transform_indices = @transform_2, window_bounds = array<i64: 1, 1, 16, 200>}]} {
    %c16_i32 = arith.constant 16 : i32
    %0 = arith.muli %arg2, %c16_i32 : i32
    %1 = tpu.assume_multiple %0, 8 : i32
    %cst = arith.constant 0.000000e+00 : f32
    %2 = vector.broadcast %cst : f32 to vector<24x56xf32>
    %c0 = arith.constant 0 : index
    %c200 = arith.constant 200 : index
    %3 = vector.load %arg6[%c0, %c200] : memref<24x256xf32, #tpu.memory_space<vmem>>, vector<24x56xf32>
    tpu.vector_store %arg6[%c0, %c200], %2 {strides = array<i32>} : memref<24x256xf32, #tpu.memory_space<vmem>>, vector<24x56xf32>,
    %c0_0 = arith.constant 0 : index
    %c0_1 = arith.constant 0 : index
    %4 = arith.index_cast %1 : i32 to index
    %c0_2 = arith.constant 0 : index
    %5 = vector.load %arg4[%c0_0, %c0_1, %4, %c0_2] : memref<1x1x64x200xf32, #tpu.memory_space<vmem>>, vector<1x1x16x200xf32>
    %6 = vector.shape_cast %5 : vector<1x1x16x200xf32> to vector<16x200xf32>
    %c0_3 = arith.constant 0 : index
    %c0_4 = arith.constant 0 : index
    %7 = vector.load %arg6[%c0_3, %c0_4] : memref<24x256xf32, #tpu.memory_space<vmem>>, vector<16x200xf32>
    tpu.vector_store %arg6[%c0_3, %c0_4], %6 {strides = array<i32>} : memref<24x256xf32, #tpu.memory_space<vmem>>, vector<16x200xf32>,
    %c3_i32 = arith.constant 3 : i32
    %8 = arith.cmpi slt, %arg2, %c3_i32 : i32
    %9 = arith.extui %8 : i1 to i32
    %c0_i32 = arith.constant 0 : i32
    %10 = arith.cmpi ne, %9, %c0_i32 : i32
    scf.if %10 {
      %c16_i32_19 = arith.constant 16 : i32
      %64 = arith.addi %1, %c16_i32_19 : i32
      %c0_20 = arith.constant 0 : index
      %c0_21 = arith.constant 0 : index
      %65 = arith.index_cast %64 : i32 to index
      %c0_22 = arith.constant 0 : index
      %66 = vector.load %arg4[%c0_20, %c0_21, %65, %c0_22] : memref<1x1x64x200xf32, #tpu.memory_space<vmem>>, vector<1x1x1x200xf32>
      %67 = vector.shape_cast %66 : vector<1x1x1x200xf32> to vector<1x200xf32>
      %c16 = arith.constant 16 : index
      %c0_23 = arith.constant 0 : index
      %68 = vector.load %arg6[%c16, %c0_23] : memref<24x256xf32, #tpu.memory_space<vmem>>, vector<1x200xf32>
      tpu.vector_store %arg6[%c16, %c0_23], %67 {strides = array<i32>} : memref<24x256xf32, #tpu.memory_space<vmem>>, vector<1x200xf32>,
    } else {
    }
    %c3_i32_5 = arith.constant 3 : i32
    %11 = arith.cmpi eq, %arg2, %c3_i32_5 : i32
    %12 = arith.extui %11 : i1 to i32
    %c0_i32_6 = arith.constant 0 : i32
    %13 = arith.cmpi ne, %12, %c0_i32_6 : i32
    scf.if %13 {
      %cst_19 = arith.constant 0.000000e+00 : f32
      %64 = vector.broadcast %cst_19 : f32 to vector<1x200xf32>
      %c16 = arith.constant 16 : index
      %c0_20 = arith.constant 0 : index
      %65 = vector.load %arg6[%c16, %c0_20] : memref<24x256xf32, #tpu.memory_space<vmem>>, vector<1x200xf32>
      tpu.vector_store %arg6[%c16, %c0_20], %64 {strides = array<i32>} : memref<24x256xf32, #tpu.memory_space<vmem>>, vector<1x200xf32>,
    } else {
    }
    %c0_i32_7 = arith.constant 0 : i32
    %14 = arith.cmpi sgt, %arg2, %c0_i32_7 : i32
    %15 = arith.extui %14 : i1 to i32
    %c0_i32_8 = arith.constant 0 : i32
    %16 = arith.cmpi ne, %15, %c0_i32_8 : i32
    scf.if %16 {
      %c1_i32_19 = arith.constant 1 : i32
      %64 = arith.subi %1, %c1_i32_19 : i32
      %c0_20 = arith.constant 0 : index
      %c0_21 = arith.constant 0 : index
      %65 = arith.index_cast %64 : i32 to index
      %c0_22 = arith.constant 0 : index
      %66 = vector.load %arg4[%c0_20, %c0_21, %65, %c0_22] : memref<1x1x64x200xf32, #tpu.memory_space<vmem>>, vector<1x1x1x200xf32>
      %67 = vector.shape_cast %66 : vector<1x1x1x200xf32> to vector<1x200xf32>
      %c23 = arith.constant 23 : index
      %c0_23 = arith.constant 0 : index
      %68 = vector.load %arg6[%c23, %c0_23] : memref<24x256xf32, #tpu.memory_space<vmem>>, vector<1x200xf32>
      tpu.vector_store %arg6[%c23, %c0_23], %67 {strides = array<i32>} : memref<24x256xf32, #tpu.memory_space<vmem>>, vector<1x200xf32>,
    } else {
    }
    %c0_i32_9 = arith.constant 0 : i32
    %17 = arith.cmpi eq, %arg2, %c0_i32_9 : i32
    %18 = arith.extui %17 : i1 to i32
    %c0_i32_10 = arith.constant 0 : i32
    %19 = arith.cmpi ne, %18, %c0_i32_10 : i32
    scf.if %19 {
      %cst_19 = arith.constant 0.000000e+00 : f32
      %64 = vector.broadcast %cst_19 : f32 to vector<1x200xf32>
      %c23 = arith.constant 23 : index
      %c0_20 = arith.constant 0 : index
      %65 = vector.load %arg6[%c23, %c0_20] : memref<24x256xf32, #tpu.memory_space<vmem>>, vector<1x200xf32>
      tpu.vector_store %arg6[%c23, %c0_20], %64 {strides = array<i32>} : memref<24x256xf32, #tpu.memory_space<vmem>>, vector<1x200xf32>,
    } else {
    }
    %c0_11 = arith.constant 0 : index
    %20 = memref.load %arg3[%c0_11] : memref<9xf32, #tpu.memory_space<smem>>
    %c1 = arith.constant 1 : index
    %21 = memref.load %arg3[%c1] : memref<9xf32, #tpu.memory_space<smem>>
    %c2 = arith.constant 2 : index
    %22 = memref.load %arg3[%c2] : memref<9xf32, #tpu.memory_space<smem>>
    %c3 = arith.constant 3 : index
    %23 = memref.load %arg3[%c3] : memref<9xf32, #tpu.memory_space<smem>>
    %c4 = arith.constant 4 : index
    %24 = memref.load %arg3[%c4] : memref<9xf32, #tpu.memory_space<smem>>
    %c5 = arith.constant 5 : index
    %25 = memref.load %arg3[%c5] : memref<9xf32, #tpu.memory_space<smem>>
    %c6 = arith.constant 6 : index
    %26 = memref.load %arg3[%c6] : memref<9xf32, #tpu.memory_space<smem>>
    %c7 = arith.constant 7 : index
    %27 = memref.load %arg3[%c7] : memref<9xf32, #tpu.memory_space<smem>>
    %c8 = arith.constant 8 : index
    %28 = memref.load %arg3[%c8] : memref<9xf32, #tpu.memory_space<smem>>
    %c0_12 = arith.constant 0 : index
    %c0_13 = arith.constant 0 : index
    %29 = vector.load %arg6[%c0_12, %c0_13] : memref<24x256xf32, #tpu.memory_space<vmem>>, vector<24x256xf32>
    %c1_i32 = arith.constant 1 : i32
    %30 = tpu.dynamic_rotate %29 by %c1_i32 dim 1 : vector<24x256xf32>, i32 -> vector<24x256xf32>
    %c255_i32 = arith.constant 255 : i32
    %31 = tpu.dynamic_rotate %29 by %c255_i32 dim 1 : vector<24x256xf32>, i32 -> vector<24x256xf32>
    %32 = vector.broadcast %20 : f32 to vector<24x256xf32>
    %33 = arith.mulf %32, %30 : vector<24x256xf32>
    %34 = vector.broadcast %21 : f32 to vector<24x256xf32>
    %35 = arith.mulf %34, %29 : vector<24x256xf32>
    %36 = arith.addf %33, %35 : vector<24x256xf32>
    %37 = vector.broadcast %22 : f32 to vector<24x256xf32>
    %38 = arith.mulf %37, %31 : vector<24x256xf32>
    %39 = arith.addf %36, %38 : vector<24x256xf32>
    %c1_i32_14 = arith.constant 1 : i32
    %40 = tpu.dynamic_rotate %39 by %c1_i32_14 dim 0 : vector<24x256xf32>, i32 -> vector<24x256xf32>
    %41 = vector.broadcast %23 : f32 to vector<24x256xf32>
    %42 = arith.mulf %41, %30 : vector<24x256xf32>
    %43 = vector.broadcast %24 : f32 to vector<24x256xf32>
    %44 = arith.mulf %43, %29 : vector<24x256xf32>
    %45 = arith.addf %42, %44 : vector<24x256xf32>
    %46 = vector.broadcast %25 : f32 to vector<24x256xf32>
    %47 = arith.mulf %46, %31 : vector<24x256xf32>
    %48 = arith.addf %45, %47 : vector<24x256xf32>
    %49 = arith.addf %40, %48 : vector<24x256xf32>
    %50 = vector.broadcast %26 : f32 to vector<24x256xf32>
    %51 = arith.mulf %50, %30 : vector<24x256xf32>
    %52 = vector.broadcast %27 : f32 to vector<24x256xf32>
    %53 = arith.mulf %52, %29 : vector<24x256xf32>
    %54 = arith.addf %51, %53 : vector<24x256xf32>
    %55 = vector.broadcast %28 : f32 to vector<24x256xf32>
    %56 = arith.mulf %55, %31 : vector<24x256xf32>
    %57 = arith.addf %54, %56 : vector<24x256xf32>
    %c23_i32 = arith.constant 23 : i32
    %58 = tpu.dynamic_rotate %57 by %c23_i32 dim 0 : vector<24x256xf32>, i32 -> vector<24x256xf32>
    %59 = arith.addf %49, %58 : vector<24x256xf32>
    %60 = vector.extract_strided_slice %59 {offsets = [0, 0], sizes = [16, 200], strides = [1, 1]} : vector<24x256xf32> to vector<16x200xf32>
    %c0_15 = arith.constant 0 : index
    %c0_16 = arith.constant 0 : index
    %c0_17 = arith.constant 0 : index
    %c0_18 = arith.constant 0 : index
    %61 = vector.load %arg5[%c0_15, %c0_16, %c0_17, %c0_18] : memref<1x1x16x200xf32, #tpu.memory_space<vmem>>, vector<1x1x16x200xf32>
    %62 = vector.shape_cast %61 : vector<1x1x16x200xf32> to vector<16x200xf32>
    %63 = vector.shape_cast %60 : vector<16x200xf32> to vector<1x1x16x200xf32>
    tpu.vector_store %arg5[%c0_15, %c0_16, %c0_17, %c0_18], %63 {strides = array<i32>} : memref<1x1x16x200xf32, #tpu.memory_space<vmem>>, vector<1x1x16x200xf32>,
    return
  }
  func.func @transform_0(%arg0: i32, %arg1: i32, %arg2: i32) -> i32 {
    %c0_i32 = arith.constant 0 : i32
    %c0_i32_0 = arith.constant 0 : i32
    return %c0_i32 : i32
  }
  func.func @transform_1(%arg0: i32, %arg1: i32, %arg2: i32) -> (i32, i32, i32, i32) {
    %c0_i32 = arith.constant 0 : i32
    %c0_i32_0 = arith.constant 0 : i32
    %c0_i32_1 = arith.constant 0 : i32
    return %arg0, %arg1, %c0_i32, %c0_i32_0 : i32, i32, i32, i32
  }
  func.func @transform_2(%arg0: i32, %arg1: i32, %arg2: i32) -> (i32, i32, i32, i32) {
    %c0_i32 = arith.constant 0 : i32
    %c0_i32_0 = arith.constant 0 : i32
    return %arg0, %arg1, %arg2, %c0_i32 : i32, i32, i32, i32
  }
}

</mosaic_0001>

<llo_original>
// kernel: conv2d_blockdiag_same.1
$region0: #{conv2d_blockdiag_same.1}
  #allocation0 [shape = 'u32[]', space=smem, size = 0x4, offset = 0x4, fixed_abs, tag = 'smem constant byte address 0x4 - core index']
  #allocation1 [shape = 'u32[144,128]{1,0:T(1,128)}', space=vmem, size = 0x12000, scoped, tag = 'internal scratch']
  #allocation2 [shape = 'f32[24,256]{1,0:T(8,128)}', space=vmem, size = 0x6000, scoped, tag = 'scratch operand']
  %s0 = inlined_call_operand.vmem [shape: f32[9], index: 0, kind: input, shape index: {}]
  %s1 = inlined_call_operand.hbm [shape: f32[1,3,64,200], index: 1, kind: input, shape index: {}]
  %s2 = inlined_call_operand.hbm [shape: f32[1,3,64,200], index: 2, kind: output, shape index: {}]
  %s3 = sld [smem:[#allocation0]]
  $region65: #{conv2d_blockdiag_same.1} parent=0
    _
  %s5 = ssub.s32 1, %s3
  %s6 = scalar_select 0, %s5, %s3
  $region1: #{conv2d_blockdiag_same.1} parent=0
    #allocation3 [shape = 'u8[512]{0}', space=smem, size = 0x200, scoped, tag = 'input window, operand 0, single buffered']
    #allocation4 [shape = 's32[2]{0}', space=sflag, size = 0x8, scoped, tag = 'scoped memory for conv2d_blockdiag_same.1']
    #allocation5 [shape = 's32[2]{0}', space=sflag, size = 0x8, scoped, tag = 'scoped memory for conv2d_blockdiag_same.1']
    #allocation6 [shape = 's32[2]{0}', space=sflag, size = 0x8, scoped, tag = 'scoped memory for conv2d_blockdiag_same.1']
    #allocation7 [shape = 'u8[131072]{0}', space=vmem, size = 0x20000, scoped, tag = 'input window, operand 1']
    #allocation8 [shape = 'u8[32768]{0}', space=vmem, size = 0x8000, scoped, tag = 'output window, operand 0']
    %7 = vsyncpa [#allocation6], 0
    %8 = vsyncpa [#allocation4], 0
    %s9 = scalar_lea.sflag [#allocation4], 1
    %10 = vsyncpa %s9, 0
    %11 = vsyncpa [#allocation5], 0
    %s12 = scalar_lea.sflag [#allocation5], 1
    %13 = vsyncpa %s12, 0
    loop: start=0, step=1, limit=14
    $region2: #{conv2d_blockdiag_same.1} parent=1 // loop_pre_header
      _
    $region3: #{conv2d_blockdiag_same.1} parent=1 // loop_header
      %s15 = sphi 0, %s19
      %p16 = scmp.ge.s32.totalorder %s15, 14
      %s22 = sphi 0, %s41
      %s23 = sphi 0, %s37
      %s24 = sphi 0, %s33
      %s25 = sphi 0, %s22
      %s26 = sphi 0, %s23
      %s27 = sphi 0, %s24
      %s28 = sphi 0, %s25
      %s29 = sphi 0, %s26
      %s30 = sphi 0, %s27
      %s42 = sphi 0, %s42
      %s44 = sphi 0, %s42
      %s45 = sphi 0, %s44
      %s59 = sphi 0, %s45
      %s67 = sphi 0, %s69
      %s70 = sphi 0, %s67
      %s71 = sphi 0, %s70
      %s87 = sphi 0, %s71
      %s97 = sphi 0, %s99
      %s100 = sphi 0, %s97
      %s101 = sphi 0, %s100
      %s117 = sphi 0, %s101
    $region4: #{conv2d_blockdiag_same.1} parent=1 // loop_header_branch
      %18 = sbr.rel (%p16) target = $region8
    $region5: #{conv2d_blockdiag_same.1} parent=1 // loop_body
      %s20 = ssub.s32 %s15, 1
      %s21 = ssub.s32 %s15, 2
      %s31 = sadd.s32 1, %s24
      %p32 = scmp.ge.s32.totalorder %s31, 4
      %s33 = scalar_select %p32, 0, %s31
      %s34 = sadd.s32 1, %s23
      %s35 = scalar_select %p32, %s34, %s23
      %p36 = scmp.ge.s32.totalorder %s35, 3
      %s37 = scalar_select %p36, 0, %s35
      %s38 = sadd.s32 1, %s22
      %s39 = scalar_select %p36, %s38, %s22
      %p40 = scmp.ge.s32.totalorder %s39, 1
      %s41 = scalar_select %p40, 0, %s39
      %s43 = sadd.s32 %s42, 1
      %p46 = scmp.eq.s32.totalorder %s15, 11
      %p47 = scmp.ne.s32.totalorder %s42, %s44
      %p48 = scmp.eq.s32.totalorder %s15, 0
      %p49 = por %p47, %p48
      %p50 = scmp.ne.s32.totalorder %s42, %s44
      %p51 = scmp.eq.s32.totalorder %s20, 11
      %p52 = por %p50, %p51
      %p53 = scmp.ne.s32.totalorder %s44, %s45
      %p54 = scmp.eq.s32.totalorder %s20, 0
      %p55 = por %p53, %p54
      %p56 = scmp.ne.s32.totalorder %s44, %s45
      %p57 = scmp.eq.s32.totalorder %s21, 11
      %p58 = por %p56, %p57
      %p60 = scmp.ne.s32.totalorder %s45, %s59
      %p61 = scmp.eq.s32.totalorder %s21, 0
      %p62 = por %p60, %p61
      %s63 = ssub.s32 %s22, %s41
      %s64 = ssub.s32 %s23, %s37
      %s65 = sor.u32 %s63, %s64
      %p66 = scmp.eq.s32.totalorder %s65, 0
      %s68 = sadd.s32 %s67, 1
      %s69 = scalar_select %p66, %s67, %s68
      %p72 = pneg %p66
      %p73 = scmp.eq.s32.totalorder %s15, 11
      %p74 = por %p72, %p73
      %p75 = scmp.ne.s32.totalorder %s67, %s70
      %p76 = scmp.eq.s32.totalorder %s15, 0
      %p77 = por %p75, %p76
      %p78 = scmp.ne.s32.totalorder %s67, %s70
      %p79 = scmp.eq.s32.totalorder %s20, 11
      %p80 = por %p78, %p79
      %p81 = scmp.ne.s32.totalorder %s70, %s71
      %p82 = scmp.eq.s32.totalorder %s20, 0
      %p83 = por %p81, %p82
      %p84 = scmp.ne.s32.totalorder %s70, %s71
      %p85 = scmp.eq.s32.totalorder %s21, 11
      %p86 = por %p84, %p85
      %p88 = scmp.ne.s32.totalorder %s71, %s87
      %p89 = scmp.eq.s32.totalorder %s21, 0
      %p90 = por %p88, %p89
      %s91 = ssub.s32 %s22, %s41
      %s92 = ssub.s32 %s23, %s37
      %s93 = sor.u32 %s91, %s92
      %s94 = ssub.s32 %s24, %s33
      %s95 = sor.u32 %s93, %s94
      %p96 = scmp.eq.s32.totalorder %s95, 0
      %s98 = sadd.s32 %s97, 1
      %s99 = scalar_select %p96, %s97, %s98
      %p102 = pneg %p96
      %p103 = scmp.eq.s32.totalorder %s15, 11
      %p104 = por %p102, %p103
      %p105 = scmp.ne.s32.totalorder %s97, %s100
      %p106 = scmp.eq.s32.totalorder %s15, 0
      %p107 = por %p105, %p106
      %p108 = scmp.ne.s32.totalorder %s97, %s100
      %p109 = scmp.eq.s32.totalorder %s20, 11
      %p110 = por %p108, %p109
      %p111 = scmp.ne.s32.totalorder %s100, %s101
      %p112 = scmp.eq.s32.totalorder %s20, 0
      %p113 = por %p111, %p112
      %p114 = scmp.ne.s32.totalorder %s100, %s101
      %p115 = scmp.eq.s32.totalorder %s21, 11
      %p116 = por %p114, %p115
      %p118 = scmp.ne.s32.totalorder %s101, %s117
      %p119 = scmp.eq.s32.totalorder %s21, 0
      %p120 = por %p118, %p119
      %p121 = scmp.le.s32.totalorder 1, %s15
      %p122 = scmp.lt.s32.totalorder %s15, 13
      %p123 = pnand %p121, %p122
      %p124 = pneg %p123
      // Predicated region
      $region9: #{conv2d_blockdiag_same.1} parent=5 // pred_check
        _
      $region10: #{conv2d_blockdiag_same.1} parent=5 // pred_check_branch
        %126 = sbr.rel (%p123) target = $region12
      $region11: #{conv2d_blockdiag_same.1} parent=5 // pred_region
        %s127 = ssub.s32 %s15, 1
        // Predicated region
        $region13: #{conv2d_blockdiag_same.1} parent=11 // pred_check
          %p128 = pneg %p55
        $region14: #{conv2d_blockdiag_same.1} parent=11 // pred_check_branch
          %130 = sbr.rel (%p128) target = $region16
        $region15: #{conv2d_blockdiag_same.1} parent=11 // pred_region
          %s132 = ssub.s32 16, 16
          %133 = vsyncadd [#allocation6], %s132
          %s135 = sshll.u32 %s0, 4
          %s136 = int_to_ptr.vmem [resolvable:$true] %s135
          %138 = dma.vmem_to_smem %s136, 16, [#allocation3], [#allocation6]
        $region16: #{conv2d_blockdiag_same.1} parent=11 // pred_fallthru
          _
      $region12: #{conv2d_blockdiag_same.1} parent=5 // pred_fallthru
        _
      %p139 = scmp.lt.s32.totalorder %s15, 12
      // Predicated region
      $region17: #{conv2d_blockdiag_same.1} parent=5 // pred_check
        %p140 = pneg %p139
      $region18: #{conv2d_blockdiag_same.1} parent=5 // pred_check_branch
        %142 = sbr.rel (%p140) target = $region20
      $region19: #{conv2d_blockdiag_same.1} parent=5 // pred_region
        // Predicated region
        $region21: #{conv2d_blockdiag_same.1} parent=19 // pred_check
          %p143 = pneg %p77
        $region22: #{conv2d_blockdiag_same.1} parent=19 // pred_check_branch
          %145 = sbr.rel (%p143) target = $region24
        $region23: #{conv2d_blockdiag_same.1} parent=19 // pred_region
          %s146 = sand.u32 %s67, 1
          %s147 = scalar_lea.sflag [#allocation4], %s146
          %s148 = sand.u32 %s67, 1
          %s149 = smul.addr %s148, 128
          %s150 = scalar_lea.vmem [#allocation7], %s149
          %s152 = ssub.s32 2048, 2048
          %153 = vsyncadd %s147, %s152
          %s154 = smul.addr %s23, 16
          %s155 = smul.addr %s22, 48
          %s156 = sadd.s32 %s154, %s155
          %s157 = smul.addr %s156, 128
          %s158 = scalar_lea.hbm %s1, %s157
          %s159 = sshll.u32 %s150, 4
          %s160 = int_to_ptr.vmem [resolvable:$true] %s159
          %165 = dma.hbm_to_vmem [thread:$0]  %s158, 2048, %s160, %s147, 256, 256, 16
        $region24: #{conv2d_blockdiag_same.1} parent=19 // pred_fallthru
          _
      $region20: #{conv2d_blockdiag_same.1} parent=5 // pred_fallthru
        _
      %p166 = scmp.le.s32.totalorder 1, %s15
      %p167 = scmp.lt.s32.totalorder %s15, 13
      %p168 = pnand %p166, %p167
      %p169 = pneg %p168
      // Predicated region
      $region25: #{conv2d_blockdiag_same.1} parent=5 // pred_check
        _
      $region26: #{conv2d_blockdiag_same.1} parent=5 // pred_check_branch
        %171 = sbr.rel (%p168) target = $region28
      $region27: #{conv2d_blockdiag_same.1} parent=5 // pred_region
        %s172 = ssub.s32 %s15, 1
        // Predicated region
        $region29: #{conv2d_blockdiag_same.1} parent=27 // pred_check
          %p173 = pneg %p55
        $region30: #{conv2d_blockdiag_same.1} parent=27 // pred_check_branch
          %175 = sbr.rel (%p173) target = $region32
        $region31: #{conv2d_blockdiag_same.1} parent=27 // pred_region
          %176 = dma.done [#allocation6], 16
        $region32: #{conv2d_blockdiag_same.1} parent=27 // pred_fallthru
          _
        %s177 = sand.u32 %s70, 1
        %s178 = scalar_lea.sflag [#allocation4], %s177
        %s179 = sand.u32 %s70, 1
        %s180 = smul.addr %s179, 128
        %s181 = scalar_lea.vmem [#allocation7], %s180
        // Predicated region
        $region33: #{conv2d_blockdiag_same.1} parent=27 // pred_check
          %p182 = pneg %p83
        $region34: #{conv2d_blockdiag_same.1} parent=27 // pred_check_branch
          %184 = sbr.rel (%p182) target = $region36
        $region35: #{conv2d_blockdiag_same.1} parent=27 // pred_region
          %185 = dma.done %s178, 2048
        $region36: #{conv2d_blockdiag_same.1} parent=27 // pred_fallthru
          _
        %186 = sfence
        %p187 = pneg %p55
        %p188 = pneg %p52
        %s189 = sand.u32 %s70, 1
        %s190 = scalar_lea.sflag [#allocation4], %s189
        %s191 = sand.u32 %s70, 1
        %s192 = smul.addr %s191, 128
        %s193 = scalar_lea.vmem [#allocation7], %s192
        %p194 = pneg %p83
        %p195 = pneg %p80
        %p196 = pneg %p113
        %p197 = pneg %p110
        %s198 = sand.u32 %s100, 1
        %s199 = scalar_lea.sflag [#allocation5], %s198
        %s200 = sand.u32 %s100, 1
        %s201 = smul.addr %s200, 32
        %s202 = scalar_lea.vmem [#allocation8], %s201
        %s203 = smul.u32 2, %s27
        %s204 = smul.u32 %s27, 16
        %vm205 = vcmask 1048128
        %206 = vst.msk [vmem:[#allocation2 + $0x8] sm:$0xff] %vm205, 0.0
        %207 = vst.msk [vmem:[#allocation2 + $0x18] sm:$0xff] %vm205, 0.0
        %208 = vst.msk [vmem:[#allocation2 + $0x28] sm:$0xff] %vm205, 0.0
        %s209 = sshra.s32 %s204, 3
        %s210 = sand.u32 %s204, 7
        %s211 = smul.u32 %s209, 2
        %s212 = smul.addr %s211, 8
        %s213 = scalar_lea.vmem %s181, %s212 [#allocation7]
        %v214 = vld [vmem:[%s213] sm:$0xff]
        %v215 = vld [vmem:[%s213 + $0x8] sm:$0xff]
        %v216 = vld [vmem:[%s213 + $0x10] sm:$0xff]
        %v217 = vld [vmem:[%s213 + $0x18] sm:$0xff]
        %218 = vst [vmem:[#allocation2] sm:$0xff] %v214
        %vm219 = vcmask 588800
        %220 = vst.msk [vmem:[#allocation2 + $0x8] sm:$0xff] %vm219, %v215
        %221 = vst [vmem:[#allocation2 + $0x10] sm:$0xff] %v216
        %222 = vst.msk [vmem:[#allocation2 + $0x18] sm:$0xff] %vm219, %v217
        %p223 = scmp.lt.s32.totalorder %s27, 3
        // Predicated region
        $region37: #{conv2d_blockdiag_same.1} parent=27 // pred_check
          %p224 = pneg %p223
        $region38: #{conv2d_blockdiag_same.1} parent=27 // pred_check_branch
          %226 = sbr.rel (%p224) target = $region40
        $region39: #{conv2d_blockdiag_same.1} parent=27 // pred_region
          %s227 = sadd.s32 %s204, 16
          %s228 = sshra.s32 %s227, 3
          %s229 = sand.u32 %s227, 7
          %s230 = smul.u32 %s228, 2
          %s231 = smul.addr %s230, 8
          %s232 = scalar_lea.vmem %s181, %s231 [#allocation7]
          %v233 = vld [vmem:[%s232] ss:$8 sm:$0x3]
          %v234 = vlaneseq
          %vm235 = vcmp.ge.s32.totalorder %v234, 0
          %vm236 = vcmp.lt.s32.totalorder %v234, 200
          %vm237 = vmand %vm235, %vm236
          %s238 = scalar_lea.vmem [#allocation2], 32
          %239 = vst.msk [vmem:[%s238] ss:$8 sm:$0x3] %vm237, %v233
          %240 = vst.msk [vmem:[%s238] ss:$8 sm:$0x0] %vm237, %v233
        $region40: #{conv2d_blockdiag_same.1} parent=27 // pred_fallthru
          _
        %p241 = scmp.eq.s32.totalorder %s27, 3
        // Predicated region
        $region41: #{conv2d_blockdiag_same.1} parent=27 // pred_check
          %p242 = pneg %p241
        $region42: #{conv2d_blockdiag_same.1} parent=27 // pred_check_branch
          %244 = sbr.rel (%p242) target = $region44
        $region43: #{conv2d_blockdiag_same.1} parent=27 // pred_region
          %v245 = vlaneseq
          %vm246 = vcmp.ge.s32.totalorder %v245, 0
          %vm247 = vcmp.lt.s32.totalorder %v245, 200
          %vm248 = vmand %vm246, %vm247
          %s249 = scalar_lea.vmem [#allocation2], 32
          %250 = vst.msk [vmem:[%s249] ss:$8 sm:$0x3] %vm248, 0.0
          %251 = vst.msk [vmem:[%s249] ss:$8 sm:$0x0] %vm248, 0.0
        $region44: #{conv2d_blockdiag_same.1} parent=27 // pred_fallthru
          _
        %p252 = scmp.gt.s32.totalorder %s27, 0
        // Predicated region
        $region45: #{conv2d_blockdiag_same.1} parent=27 // pred_check
          %p253 = pneg %p252
        $region46: #{conv2d_blockdiag_same.1} parent=27 // pred_check_branch
          %255 = sbr.rel (%p253) target = $region48
        $region47: #{conv2d_blockdiag_same.1} parent=27 // pred_region
          %s256 = ssub.s32 %s204, 1
          %s257 = sshra.s32 %s256, 3
          %s258 = sand.u32 %s256, 7
          %s259 = sshra.s32 %s256, 3
          %s260 = sand.u32 %s256, 7
          %s261 = smul.u32 %s257, 2
          %s262 = smul.u32 %s261, 8
          %s263 = sadd.s32 %s262, %s260
          %s264 = scalar_lea.vmem %s181, %s263 [#allocation7]
          %v265 = vld [vmem:[%s264] ss:$8 sm:$0x3]
          %v266 = vlaneseq
          %vm267 = vcmp.ge.s32.totalorder %v266, 0
          %vm268 = vcmp.lt.s32.totalorder %v266, 200
          %vm269 = vmand %vm267, %vm268
          %s270 = scalar_lea.vmem [#allocation2], 39
          %271 = vst.msk [vmem:[%s270] ss:$8 sm:$0x3] %vm269, %v265
          %272 = vst.msk [vmem:[%s270] ss:$8 sm:$0x0] %vm269, %v265
        $region48: #{conv2d_blockdiag_same.1} parent=27 // pred_fallthru
          _
        %p273 = scmp.eq.s32.totalorder %s27, 0
        // Predicated region
        $region49: #{conv2d_blockdiag_same.1} parent=27 // pred_check
          %p274 = pneg %p273
        $region50: #{conv2d_blockdiag_same.1} parent=27 // pred_check_branch
          %276 = sbr.rel (%p274) target = $region52
        $region51: #{conv2d_blockdiag_same.1} parent=27 // pred_region
          %v277 = vlaneseq
          %vm278 = vcmp.ge.s32.totalorder %v277, 0
          %vm279 = vcmp.lt.s32.totalorder %v277, 200
          %vm280 = vmand %vm278, %vm279
          %s281 = scalar_lea.vmem [#allocation2], 39
          %282 = vst.msk [vmem:[%s281] ss:$8 sm:$0x3] %vm280, 0.0
          %283 = vst.msk [vmem:[%s281] ss:$8 sm:$0x0] %vm280, 0.0
        $region52: #{conv2d_blockdiag_same.1} parent=27 // pred_fallthru
          _
        %s284 = sld [smem:[#allocation3]]
        %s285 = sld [smem:[#allocation3 + $0x1]]
        %s286 = sld [smem:[#allocation3 + $0x2]]
        %s287 = sld [smem:[#allocation3 + $0x3]]
        %s288 = sld [smem:[#allocation3 + $0x4]]
        %s289 = sld [smem:[#allocation3 + $0x5]]
        %s290 = sld [smem:[#allocation3 + $0x6]]
        %s291 = sld [smem:[#allocation3 + $0x7]]
        %s292 = sld [smem:[#allocation3 + $0x8]]
        %v293 = vld [vmem:[#allocation2] sm:$0xff]
        %v294 = vld [vmem:[#allocation2 + $0x8] sm:$0xff]
        %v295 = vld [vmem:[#allocation2 + $0x10] sm:$0xff]
        %v296 = vld [vmem:[#allocation2 + $0x18] sm:$0xff]
        %v297 = vld [vmem:[#allocation2 + $0x20] sm:$0xff]
        %v298 = vld [vmem:[#allocation2 + $0x28] sm:$0xff]
        %299 = vrot.lane.b32.xlu0 %v293, 1
        %v300 = vpop.permute.xlu0 %299
        %301 = vrot.lane.b32.xlu0 %v295, 1
        %v302 = vpop.permute.xlu0 %301
        %303 = vrot.lane.b32.xlu0 %v297, 1
        %v304 = vpop.permute.xlu0 %303
        %305 = vrot.lane.b32.xlu0 %v294, 1
        %v306 = vpop.permute.xlu0 %305
        %307 = vrot.lane.b32.xlu0 %v296, 1
        %v308 = vpop.permute.xlu0 %307
        %309 = vrot.lane.b32.xlu0 %v298, 1
        %v310 = vpop.permute.xlu0 %309
        %v311 = vlaneseq
        %v312 = vand.u32 %v311, 127
        %vm313 = vcmp.lt.s32.totalorder %v312, 1
        %v314 = vsel %vm313, %v300, %v306
        %v315 = vsel %vm313, %v302, %v308
        %v316 = vsel %vm313, %v304, %v310
        %v317 = vsel %vm313, %v306, %v300
        %v318 = vsel %vm313, %v308, %v302
        %v319 = vsel %vm313, %v310, %v304
        %320 = vrot.lane.b32.xlu0 %v293, 127
        %v321 = vpop.permute.xlu0 %320
        %322 = vrot.lane.b32.xlu0 %v295, 127
        %v323 = vpop.permute.xlu0 %322
        %324 = vrot.lane.b32.xlu0 %v297, 127
        %v325 = vpop.permute.xlu0 %324
        %326 = vrot.lane.b32.xlu0 %v294, 127
        %v327 = vpop.permute.xlu0 %326
        %328 = vrot.lane.b32.xlu0 %v296, 127
        %v329 = vpop.permute.xlu0 %328
        %330 = vrot.lane.b32.xlu0 %v298, 127
        %v331 = vpop.permute.xlu0 %330
        %vm332 = vcmp.lt.s32.totalorder %v312, 127
        %v333 = vsel %vm332, %v321, %v327
        %v334 = vsel %vm332, %v323, %v329
        %v335 = vsel %vm332, %v325, %v331
        %v336 = vsel %vm332, %v327, %v321
        %v337 = vsel %vm332, %v329, %v323
        %v338 = vsel %vm332, %v331, %v325
        %v339 = vstv %s284
        %v340 = vmul.f32 %v339, %v317
        %v341 = vmul.f32 %v339, %v314
        %v342 = vmul.f32 %v339, %v318
        %v343 = vmul.f32 %v339, %v315
        %v344 = vmul.f32 %v339, %v319
        %v345 = vmul.f32 %v339, %v316
        %v346 = vstv %s285
        %v347 = vmul.f32 %v346, %v293
        %v348 = vmul.f32 %v346, %v294
        %v349 = vmul.f32 %v346, %v295
        %v350 = vmul.f32 %v346, %v296
        %v351 = vmul.f32 %v346, %v297
        %v352 = vmul.f32 %v346, %v298
        %v353 = vadd.f32 %v340, %v347
        %v354 = vadd.f32 %v341, %v348
        %v355 = vadd.f32 %v342, %v349
        %v356 = vadd.f32 %v343, %v350
        %v357 = vadd.f32 %v344, %v351
        %v358 = vadd.f32 %v345, %v352
        %v359 = vstv %s286
        %v360 = vmul.f32 %v359, %v333
        %v361 = vmul.f32 %v359, %v336
        %v362 = vmul.f32 %v359, %v334
        %v363 = vmul.f32 %v359, %v337
        %v364 = vmul.f32 %v359, %v335
        %v365 = vmul.f32 %v359, %v338
        %v366 = vadd.f32 %v353, %v360
        %v367 = vadd.f32 %v354, %v361
        %v368 = vadd.f32 %v355, %v362
        %v369 = vadd.f32 %v356, %v363
        %v370 = vadd.f32 %v357, %v364
        %v371 = vadd.f32 %v358, %v365
        %v372 = vrot.slane %v366, 7
        %v373 = vrot.slane %v367, 7
        %v374 = vrot.slane %v368, 7
        %v375 = vrot.slane %v369, 7
        %v376 = vrot.slane %v370, 7
        %v377 = vrot.slane %v371, 7
        %v378 = vlaneseq
        %v379 = vshrl.u32 %v378, 7
        %vm380 = vcmp.lt.s32.totalorder %v379, 1
        %v381 = vsel %vm380, %v372, %v374
        %v382 = vsel %vm380, %v373, %v375
        %v383 = vsel %vm380, %v376, %v372
        %v384 = vsel %vm380, %v377, %v373
        %v385 = vstv %s287
        %v386 = vmul.f32 %v385, %v317
        %v387 = vmul.f32 %v385, %v314
        %v388 = vmul.f32 %v385, %v318
        %v389 = vmul.f32 %v385, %v315
        %v390 = vstv %s288
        %v391 = vmul.f32 %v390, %v293
        %v392 = vmul.f32 %v390, %v294
        %v393 = vmul.f32 %v390, %v295
        %v394 = vmul.f32 %v390, %v296
        %v395 = vadd.f32 %v386, %v391
        %v396 = vadd.f32 %v387, %v392
        %v397 = vadd.f32 %v388, %v393
        %v398 = vadd.f32 %v389, %v394
        %v399 = vstv %s289
        %v400 = vmul.f32 %v399, %v333
        %v401 = vmul.f32 %v399, %v336
        %v402 = vmul.f32 %v399, %v334
        %v403 = vmul.f32 %v399, %v337
        %v404 = vadd.f32 %v395, %v400
        %v405 = vadd.f32 %v396, %v401
        %v406 = vadd.f32 %v397, %v402
        %v407 = vadd.f32 %v398, %v403
        %v408 = vadd.f32 %v383, %v404
        %v409 = vadd.f32 %v384, %v405
        %v410 = vadd.f32 %v381, %v406
        %v411 = vadd.f32 %v382, %v407
        %v412 = vstv %s290
        %v413 = vmul.f32 %v412, %v317
        %v414 = vmul.f32 %v412, %v314
        %v415 = vmul.f32 %v412, %v318
        %v416 = vmul.f32 %v412, %v315
        %v417 = vmul.f32 %v412, %v319
        %v418 = vmul.f32 %v412, %v316
        %v419 = vstv %s291
        %v420 = vmul.f32 %v419, %v293
        %v421 = vmul.f32 %v419, %v294
        %v422 = vmul.f32 %v419, %v295
        %v423 = vmul.f32 %v419, %v296
        %v424 = vmul.f32 %v419, %v297
        %v425 = vmul.f32 %v419, %v298
        %v426 = vadd.f32 %v413, %v420
        %v427 = vadd.f32 %v414, %v421
        %v428 = vadd.f32 %v415, %v422
        %v429 = vadd.f32 %v416, %v423
        %v430 = vadd.f32 %v417, %v424
        %v431 = vadd.f32 %v418, %v425
        %v432 = vstv %s292
        %v433 = vmul.f32 %v432, %v333
        %v434 = vmul.f32 %v432, %v336
        %v435 = vmul.f32 %v432, %v334
        %v436 = vmul.f32 %v432, %v337
        %v437 = vmul.f32 %v432, %v335
        %v438 = vmul.f32 %v432, %v338
        %v439 = vadd.f32 %v426, %v433
        %v440 = vadd.f32 %v427, %v434
        %v441 = vadd.f32 %v428, %v435
        %v442 = vadd.f32 %v429, %v436
        %v443 = vadd.f32 %v430, %v437
        %v444 = vadd.f32 %v431, %v438
        %v445 = vrot.slane %v439, 1
        %v446 = vrot.slane %v440, 1
        %v447 = vrot.slane %v441, 1
        %v448 = vrot.slane %v442, 1
        %v449 = vrot.slane %v443, 1
        %v450 = vrot.slane %v444, 1
        %vm451 = vcmp.lt.s32.totalorder %v379, 7
        %v452 = vsel %vm451, %v447, %v449
        %v453 = vsel %vm451, %v448, %v450
        %v454 = vsel %vm451, %v445, %v447
        %v455 = vsel %vm451, %v446, %v448
        %v456 = vadd.f32 %v408, %v454
        %v457 = vadd.f32 %v409, %v455
        %v458 = vadd.f32 %v410, %v452
        %v459 = vadd.f32 %v411, %v453
        %460 = vst [vmem:[%s202] sm:$0xff] %v456
        %461 = vst.msk [vmem:[%s202 + $0x8] sm:$0xff] %vm219, %v457
        %462 = vst [vmem:[%s202 + $0x10] sm:$0xff] %v458
        %463 = vst.msk [vmem:[%s202 + $0x18] sm:$0xff] %vm219, %v459
        %s464 = sand.u32 %s100, 1
        %s465 = scalar_lea.sflag [#allocation5], %s464
        %s466 = sand.u32 %s100, 1
        %s467 = smul.addr %s466, 32
        %s468 = scalar_lea.vmem [#allocation8], %s467
        // Predicated region
        $region53: #{conv2d_blockdiag_same.1} parent=27 // pred_check
          %p469 = pneg %p110
        $region54: #{conv2d_blockdiag_same.1} parent=27 // pred_check_branch
          %471 = sbr.rel (%p469) target = $region56
        $region55: #{conv2d_blockdiag_same.1} parent=27 // pred_region
          %s472 = smul.u32 2, %s27
          %s474 = ssub.s32 512, 512
          %475 = vsyncadd %s465, %s474
          %s476 = smul.addr %s472, 2
          %s477 = smul.addr %s26, 16
          %s478 = sadd.s32 %s476, %s477
          %s479 = smul.addr %s25, 48
          %s480 = sadd.s32 %s478, %s479
          %s481 = smul.addr %s480, 128
          %s482 = scalar_lea.hbm %s2, %s481
          %s483 = sshll.u32 %s468, 4
          %s484 = int_to_ptr.vmem [resolvable:$true] %s483
          %489 = dma.vmem_to_hbm [thread:$0]  %s484, 512, %s482, %s465, 256, 256, 16
        $region56: #{conv2d_blockdiag_same.1} parent=27 // pred_fallthru
          _
      $region28: #{conv2d_blockdiag_same.1} parent=5 // pred_fallthru
        _
      %p490 = scmp.le.s32.totalorder 2, %s15
      // Predicated region
      $region57: #{conv2d_blockdiag_same.1} parent=5 // pred_check
        %p491 = pneg %p490
      $region58: #{conv2d_blockdiag_same.1} parent=5 // pred_check_branch
        %493 = sbr.rel (%p491) target = $region60
      $region59: #{conv2d_blockdiag_same.1} parent=5 // pred_region
        %s494 = ssub.s32 %s15, 2
        // Predicated region
        $region61: #{conv2d_blockdiag_same.1} parent=59 // pred_check
          %p495 = pneg %p116
        $region62: #{conv2d_blockdiag_same.1} parent=59 // pred_check_branch
          %497 = sbr.rel (%p495) target = $region64
        $region63: #{conv2d_blockdiag_same.1} parent=59 // pred_region
          %s498 = sand.u32 %s101, 1
          %s499 = scalar_lea.sflag [#allocation5], %s498
          %s500 = sand.u32 %s101, 1
          %s501 = smul.addr %s500, 32
          %s502 = scalar_lea.vmem [#allocation8], %s501
          %503 = dma.done %s499, 512
        $region64: #{conv2d_blockdiag_same.1} parent=59 // pred_fallthru
          _
      $region60: #{conv2d_blockdiag_same.1} parent=5 // pred_fallthru
        _
    $region6: #{conv2d_blockdiag_same.1} parent=1 // loop_footer
      %s19 = sadd.s32 1, %s15
    $region7: #{conv2d_blockdiag_same.1} parent=1 // loop_footer_branch
      %14 = sbr.rel target = $region3
    $region8: #{conv2d_blockdiag_same.1} parent=1 // loop_exit
      _
    %504 = vsyncpa [#allocation4], 1
    %s505 = scalar_lea.sflag [#allocation4], 1
    %506 = vsyncpa %s505, 1
    %507 = vsyncpa [#allocation5], 1
    %s508 = scalar_lea.sflag [#allocation5], 1
    %509 = vsyncpa %s508, 1
    %510 = vsyncpa [#allocation6], 1
    %s511 = scalar_lea.sflag [#allocation6], 1
    %512 = vsyncpa %s511, 1

</llo_original>
